<compile_context>
chip_gen: v7x
topology: tpu7x:2x2x1
jax: 0.10.0
libtpu: 0.0.40
codegen_flags: <defaults>
</compile_context>

<pallas_src>
import functools

import jax
import jax.numpy as jnp
import numpy as np
from jax.experimental import pallas as pl
from jax.experimental.pallas import tpu as pltpu

SAMPLE_RATE = 128.0
WAVEFORM_SIZE = 256  # length of the generated waveform before center-cropping


# ----------------------------------------------------------------------------- kernel
def _inject_kernel(t_ref, coef_ref, x_ref, o_ref, *, n_ifos, kernel_size):
    """Fused sine-Gaussian synthesis + antenna projection + injection.

    t_ref    : VMEM (1, K)  f32   cropped-window time grid (constant across the grid)
    coef_ref : VMEM (TN, W) f32   packed per-sample coefficients:
                   [omega, phase, 1/(2*tau^2), coefP_0..coefP_{I-1}, coefC_0..coefC_{I-1}, pad]
                 where coefP_i = F+_i * hrss*sqrt(1+ecc), coefC_i = Fx_i * hrss*sqrt(1-ecc)
    x_ref    : VMEM (TN, I*K) f32 background kernels (lane-dense: ifos concatenated on lanes)
    o_ref    : VMEM (TN, I*K) f32 X + cropped projected waveforms
    """
    t = t_ref[...]                       # (1, K)
    coefs = coef_ref[...]                # (TN, W)

    omega = coefs[:, 0:1]                # (TN, 1)
    phase = coefs[:, 1:2]
    inv2tau2 = coefs[:, 2:3]

    # Vectorized over the TN samples in this block: full-vreg VPU/EUP utilization.
    arg = omega * t + phase                          # (TN, K)
    env = jnp.exp(-(t * t) * inv2tau2)               # (TN, K)  EUP
    c = env * jnp.cos(arg)                           # "plus" basis
    s = env * jnp.sin(arg)                           # "cross" basis

    # Project onto each detector and lay the ifos out contiguously along lanes, matching
    # the (TN, I*K) layout of x_ref.  Concatenation at 128-lane multiples is free.
    parts = []
    for i in range(n_ifos):
        cp = coefs[:, 3 + i: 4 + i]                  # (TN, 1)
        cc = coefs[:, 3 + n_ifos + i: 4 + n_ifos + i]
        parts.append(cp * c + cc * s)                # (TN, K)
    wf = parts[0] if n_ifos == 1 else jnp.concatenate(parts, axis=-1)  # (TN, I*K)

    o_ref[...] = x_ref[...] + wf


def inject_pallas(X, intrinsic_params, fp, fc, *, waveform_size, sample_rate, tn=None):
    """X: (N, I, K) f32, intrinsic_params: (N, 5) f32 [f0, q, hrss, phase, ecc],
    fp/fc: (N, I) f32 antenna-pattern factors. Returns X + cropped projected waveforms."""
    N, I, K = X.shape
    assert K % 2 == 0 and K <= waveform_size, "center-crop requires even K <= waveform_size"
    assert K % 128 == 0, "lane-dense layout requires K to be a multiple of 128"

    # ---- per-sample scalar prep (hoisted out of the kernel, plain JAX) -------------
    f32 = jnp.float32
    f0 = intrinsic_params[:, 0].astype(f32)
    q = intrinsic_params[:, 1].astype(f32)
    hrss = intrinsic_params[:, 2].astype(f32)
    phase = intrinsic_params[:, 3].astype(f32)
    ecc = intrinsic_params[:, 4].astype(f32)

    omega = (2.0 * np.pi) * f0
    tau = q / omega
    inv2tau2 = 0.5 / (tau * tau)
    coef_p = fp.astype(f32) * (hrss * jnp.sqrt(1.0 + ecc))[:, None]   # (N, I)
    coef_c = fc.astype(f32) * (hrss * jnp.sqrt(1.0 - ecc))[:, None]   # (N, I)

    ncols = 3 + 2 * I
    width = 8 * ((ncols + 7) // 8)
    coefs = jnp.concatenate(
        [omega[:, None], phase[:, None], inv2tau2[:, None], coef_p, coef_c], axis=1)
    if width != ncols:
        coefs = jnp.pad(coefs, ((0, 0), (0, width - ncols)))

    # Time grid for the cropped window only (identical values to generating the full
    # waveform and slicing [start:stop]); constant across the grid.
    center = waveform_size // 2
    start = center - K // 2
    t = ((jnp.arange(K, dtype=f32) + f32(start - center)) / f32(sample_rate))[None, :]

    # ---- batch tiling ---------------------------------------------------------------
    # Per-step VMEM ~ 2 (in+out) * 2 (double buffer) * tn*I*K*4 bytes; tn=128, I=2, K=128
    # is ~0.5 MiB -- far under every generation's VMEM budget.  Cap tn if K grows large.
    if tn is None:
        tn = 128
    tn = max(8, 8 * (int(tn) // 8))
    tn = min(tn, 8 * (-(-N // 8)))           # don't over-pad tiny batches
    n_pad = tn * (-(-N // tn))

    X2 = X.astype(f32).reshape(N, I * K)     # lane-dense: (sublane=N, lane=I*K)
    if n_pad != N:
        X2 = jnp.pad(X2, ((0, n_pad - N), (0, 0)))
        coefs = jnp.pad(coefs, ((0, n_pad - N), (0, 0)))

    kernel = functools.partial(_inject_kernel, n_ifos=I, kernel_size=K)

    grid_spec = pltpu.PrefetchScalarGridSpec(
        num_scalar_prefetch=0,
        grid=(n_pad // tn,),
        in_specs=[
            pl.BlockSpec((1, K), lambda n: (0, 0)),          # time grid (resident)
            pl.BlockSpec((tn, width), lambda n: (n, 0)),     # packed coefficient table
            pl.BlockSpec((tn, I * K), lambda n: (n, 0)),     # X, lane-dense
        ],
        out_specs=pl.BlockSpec((tn, I * K), lambda n: (n, 0)),
    )
    out2 = pl.pallas_call(
        kernel,
        out_shape=jax.ShapeDtypeStruct((n_pad, I * K), jnp.float32),
        grid_spec=grid_spec,
        input_output_aliases={2: 0},   # in-place X += waveforms
        compiler_params=pltpu.CompilerParams(dimension_semantics=("parallel",)),
    )(t, coefs, X2)

    return out2[:N].reshape(N, I, K)


# ------------------------------------------------------------------------------- glue
def _detector_tensor(x, y):
    return 0.5 * (jnp.outer(x, x) - jnp.outer(y, y))


def get_ifo_geometry():
    # Synthetic, deterministic stand-in for gw.get_ifo_geometry("H1", "L1").
    s2 = 1.0 / np.sqrt(2.0)
    h1 = _detector_tensor(jnp.array([1.0, 0.0, 0.0]), jnp.array([0.0, 1.0, 0.0]))
    l1 = _detector_tensor(jnp.array([s2, s2, 0.0]), jnp.array([-s2, s2, 0.0]))
    tensors = jnp.stack([h1, l1]).astype(jnp.float32)            # (I, 3, 3)
    vertices = jnp.zeros((2, 3), jnp.float32)                    # (I, 3)
    return tensors, vertices


def antenna_responses(dec, psi, phi, detector_tensors):
    """F+ / Fx antenna-pattern factors, (N, I) each. Tiny 3x3 einsums -> plain JAX."""
    theta = jnp.pi / 2.0 - dec
    u = jnp.stack([jnp.cos(phi) * jnp.cos(theta),
                   jnp.cos(theta) * jnp.sin(phi),
                   -jnp.sin(theta)], axis=-1)
    v = jnp.stack([-jnp.sin(phi), jnp.cos(phi), jnp.zeros_like(phi)], axis=-1)
    m = -u * jnp.sin(psi)[:, None] - v * jnp.cos(psi)[:, None]
    n = -u * jnp.cos(psi)[:, None] + v * jnp.sin(psi)[:, None]
    outer = lambda a, b: jnp.einsum("ni,nj->nij", a, b)
    plus_t = outer(m, m) - outer(n, n)
    cross_t = outer(m, n) + outer(n, m)
    fp = jnp.einsum("njk,ijk->ni", plus_t, detector_tensors)
    fc = jnp.einsum("njk,ijk->ni", cross_t, detector_tensors)
    return fp.astype(jnp.float32), fc.astype(jnp.float32)


class PEInjectorPallas:
    """JAX/Pallas port of PEInjector.forward (training path)."""

    def __init__(self, sample_rate, waveform_size):
        self.sample_rate = sample_rate
        self.waveform_size = waveform_size
        self.tensors, self.vertices = get_ifo_geometry()
        # TODO(synk): time-of-flight shifts from detector vertices (data-dependent
        # per-(batch, ifo) sample rolls) are not implemented in the kernel.

    def sample_parameters(self, N, key):
        ks = jax.random.split(key, 8)
        frequency = jax.random.uniform(ks[0], (N,), jnp.float32, 32.0, 64.0)
        quality = jax.random.uniform(ks[1], (N,), jnp.float32, 3.0, 20.0)
        hrss = jax.random.uniform(ks[2], (N,), jnp.float32, 0.5, 2.0)
        phase = jax.random.uniform(ks[3], (N,), jnp.float32, 0.0, 2.0 * np.pi)
        eccentricity = jax.random.uniform(ks[4], (N,), jnp.float32, 0.0, 0.9)
        dec = jnp.arcsin(jax.random.uniform(ks[5], (N,), jnp.float32, -1.0, 1.0))
        psi = jax.random.uniform(ks[6], (N,), jnp.float32, 0.0, np.pi)
        phi = jax.random.uniform(ks[7], (N,), jnp.float32, -np.pi, np.pi)
        intrinsic = jnp.stack([frequency, quality, hrss, phase, eccentricity], axis=1)
        return intrinsic, dec, psi, phi

    def forward(self, X, key, training=True, tn=None):
        if not training:
            return X
        N = X.shape[0]
        intrinsic, dec, psi, phi = self.sample_parameters(N, key)
        fp, fc = antenna_responses(dec, psi, phi, self.tensors)
        X_out = inject_pallas(X, intrinsic, fp, fc,
                              waveform_size=self.waveform_size,
                              sample_rate=self.sample_rate,
                              tn=tn)
        # transform(): hrss -> log10(hrss), drop eccentricity, column_stack + (dec,psi,phi)
        transformed = jnp.column_stack([
            intrinsic[:, 0], intrinsic[:, 1], jnp.log10(intrinsic[:, 2]),
            intrinsic[:, 3], dec, psi, phi,
        ])
        return X_out, transformed


# -------------------------------------------------------------------- pure-JAX reference
def reference_forward(X, intrinsic, fp, fc, waveform_size, sample_rate):
    N, I, K = X.shape
    f0, q, hrss, phase, ecc = [intrinsic[:, i] for i in range(5)]
    center = waveform_size // 2
    t = (jnp.arange(waveform_size, dtype=jnp.float32) - center) / sample_rate
    tau = q / (2.0 * np.pi * f0)
    env = jnp.exp(-(t[None, :] ** 2) / (2.0 * tau[:, None] ** 2))
    arg = 2.0 * np.pi * f0[:, None] * t[None, :] + phase[:, None]
    plus = (hrss * jnp.sqrt(1.0 + ecc))[:, None] * env * jnp.cos(arg)
    cross = (hrss * jnp.sqrt(1.0 - ecc))[:, None] * env * jnp.sin(arg)
    waveforms = fp[:, :, None] * plus[:, None, :] + fc[:, :, None] * cross[:, None, :]
    start, stop = center - K // 2, center + K // 2
    return X + waveforms[:, :, start:stop]


# ------------------------------------------------------------------------------- main
if __name__ == "__main__":
    # N=40 with tn=16 exercises multiple grid steps plus edge padding (40 -> 48 rows).
    N, I, K = 40, 2, 128
    key = jax.random.PRNGKey(0)
    kx, ksamp = jax.random.split(key)
    X = jax.random.normal(kx, (N, I, K), jnp.float32)

    injector = PEInjectorPallas(sample_rate=SAMPLE_RATE, waveform_size=WAVEFORM_SIZE)
    X_out, params = injector.forward(X, ksamp, training=True, tn=16)
    X_out = jax.block_until_ready(X_out)
    params = jax.block_until_ready(params)

    # sanity check vs. pure-JAX reference
    intrinsic, dec, psi, phi = injector.sample_parameters(N, ksamp)
    fp, fc = antenna_responses(dec, psi, phi, injector.tensors)
    X_ref = reference_forward(X, intrinsic, fp, fc, WAVEFORM_SIZE, SAMPLE_RATE)
    np.testing.assert_allclose(np.asarray(X_out), np.asarray(X_ref), rtol=1e-4, atol=2e-4)
    assert params.shape == (N, 7)
    assert X_out.shape == (N, I, K)

    print("KERNEL_OK")
</pallas_src>

<mosaic_0001>
module attributes {stable_mosaic.version = 11 : i64} {
  func.func @_inject_kernel(%arg0: i32, %arg1: memref<1x128xf32, #tpu.memory_space<vmem>>, %arg2: memref<16x8xf32, #tpu.memory_space<vmem>>, %arg3: memref<16x256xf32, #tpu.memory_space<vmem>>, %arg4: memref<16x256xf32, #tpu.memory_space<vmem>>) attributes {dimension_semantics = [#tpu.dimension_semantics<parallel>], iteration_bounds = array<i64: 3>, scalar_prefetch = 0 : i64, scratch_operands = 0 : i64, tpu.core_type = #tpu.core_type<tc>, window_params = [{pipeline_mode = #tpu.pipeline_mode<synchronous>, transform_indices = @transform_0, window_bounds = array<i64: 1, 128>}, {transform_indices = @transform_1, window_bounds = array<i64: 16, 8>}, {transform_indices = @transform_2, window_bounds = array<i64: 16, 256>}, {transform_indices = @transform_3, window_bounds = array<i64: 16, 256>}]} {
    %c0 = arith.constant 0 : index
    %c0_0 = arith.constant 0 : index
    %0 = vector.load %arg1[%c0, %c0_0] : memref<1x128xf32, #tpu.memory_space<vmem>>, vector<1x128xf32>
    %c0_1 = arith.constant 0 : index
    %c0_2 = arith.constant 0 : index
    %1 = vector.load %arg2[%c0_1, %c0_2] : memref<16x8xf32, #tpu.memory_space<vmem>>, vector<16x8xf32>
    %2 = vector.extract_strided_slice %1 {offsets = [0, 0], sizes = [16, 1], strides = [1, 1]} : vector<16x8xf32> to vector<16x1xf32>
    %3 = vector.extract_strided_slice %1 {offsets = [0, 1], sizes = [16, 1], strides = [1, 1]} : vector<16x8xf32> to vector<16x1xf32>
    %4 = vector.extract_strided_slice %1 {offsets = [0, 2], sizes = [16, 1], strides = [1, 1]} : vector<16x8xf32> to vector<16x1xf32>
    %5 = vector.broadcast %2 : vector<16x1xf32> to vector<16x128xf32>
    %6 = vector.broadcast %0 : vector<1x128xf32> to vector<16x128xf32>
    %7 = arith.mulf %5, %6 : vector<16x128xf32>
    %8 = vector.broadcast %3 : vector<16x1xf32> to vector<16x128xf32>
    %9 = arith.addf %7, %8 : vector<16x128xf32>
    %10 = arith.mulf %0, %0 : vector<1x128xf32>
    %cst = arith.constant 0.000000e+00 : f32
    %11 = vector.broadcast %cst : f32 to vector<1x128xf32>
    %12 = arith.subf %11, %10 : vector<1x128xf32>
    %13 = vector.broadcast %12 : vector<1x128xf32> to vector<16x128xf32>
    %14 = vector.broadcast %4 : vector<16x1xf32> to vector<16x128xf32>
    %15 = arith.mulf %13, %14 : vector<16x128xf32>
    %16 = math.exp %15 : vector<16x128xf32>
    %17 = math.cos %9 : vector<16x128xf32>
    %18 = arith.mulf %16, %17 : vector<16x128xf32>
    %19 = math.sin %9 : vector<16x128xf32>
    %20 = arith.mulf %16, %19 : vector<16x128xf32>
    %21 = vector.extract_strided_slice %1 {offsets = [0, 3], sizes = [16, 1], strides = [1, 1]} : vector<16x8xf32> to vector<16x1xf32>
    %22 = vector.extract_strided_slice %1 {offsets = [0, 5], sizes = [16, 1], strides = [1, 1]} : vector<16x8xf32> to vector<16x1xf32>
    %23 = vector.broadcast %21 : vector<16x1xf32> to vector<16x128xf32>
    %24 = arith.mulf %23, %18 : vector<16x128xf32>
    %25 = vector.broadcast %22 : vector<16x1xf32> to vector<16x128xf32>
    %26 = arith.mulf %25, %20 : vector<16x128xf32>
    %27 = arith.addf %24, %26 : vector<16x128xf32>
    %28 = vector.extract_strided_slice %1 {offsets = [0, 4], sizes = [16, 1], strides = [1, 1]} : vector<16x8xf32> to vector<16x1xf32>
    %29 = vector.extract_strided_slice %1 {offsets = [0, 6], sizes = [16, 1], strides = [1, 1]} : vector<16x8xf32> to vector<16x1xf32>
    %30 = vector.broadcast %28 : vector<16x1xf32> to vector<16x128xf32>
    %31 = arith.mulf %30, %18 : vector<16x128xf32>
    %32 = vector.broadcast %29 : vector<16x1xf32> to vector<16x128xf32>
    %33 = arith.mulf %32, %20 : vector<16x128xf32>
    %34 = arith.addf %31, %33 : vector<16x128xf32>
    %35 = tpu.concatenate %27, %34 in 1 : vector<16x128xf32>, vector<16x128xf32> -> vector<16x256xf32>
    %c0_3 = arith.constant 0 : index
    %c0_4 = arith.constant 0 : index
    %36 = vector.load %arg3[%c0_3, %c0_4] : memref<16x256xf32, #tpu.memory_space<vmem>>, vector<16x256xf32>
    %37 = arith.addf %36, %35 : vector<16x256xf32>
    %c0_5 = arith.constant 0 : index
    %c0_6 = arith.constant 0 : index
    %38 = vector.load %arg4[%c0_5, %c0_6] : memref<16x256xf32, #tpu.memory_space<vmem>>, vector<16x256xf32>
    tpu.vector_store %arg4[%c0_5, %c0_6], %37 {strides = array<i32>} : memref<16x256xf32, #tpu.memory_space<vmem>>, vector<16x256xf32>,
    return
  }
  func.func @transform_0(%arg0: i32) -> (i32, i32) {
    %c0_i32 = arith.constant 0 : i32
    %c0_i32_0 = arith.constant 0 : i32
    %c0_i32_1 = arith.constant 0 : i32
    return %c0_i32, %c0_i32_0 : i32, i32
  }
  func.func @transform_1(%arg0: i32) -> (i32, i32) {
    %c0_i32 = arith.constant 0 : i32
    %c0_i32_0 = arith.constant 0 : i32
    return %arg0, %c0_i32 : i32, i32
  }
  func.func @transform_2(%arg0: i32) -> (i32, i32) {
    %c0_i32 = arith.constant 0 : i32
    %c0_i32_0 = arith.constant 0 : i32
    return %arg0, %c0_i32 : i32, i32
  }
  func.func @transform_3(%arg0: i32) -> (i32, i32) {
    %c0_i32 = arith.constant 0 : i32
    %c0_i32_0 = arith.constant 0 : i32
    return %arg0, %c0_i32 : i32, i32
  }
}

</mosaic_0001>

<llo_original>
// kernel: tpu_custom_call.1
$region0: #{tpu_custom_call.1}
  #allocation0 [shape = 'u32[]', space=smem, size = 0x4, offset = 0x4, fixed_abs, tag = 'smem constant byte address 0x4 - core index']
  #allocation1 [shape = 'u32[144,128]{1,0:T(1,128)}', space=vmem, size = 0x12000, scoped, tag = 'internal scratch']
  %s0 = inlined_call_operand.vmem [shape: f32[1,128], index: 0, kind: input, shape index: {}]
  %s1 = inlined_call_operand.vmem [shape: f32[48,8], index: 1, kind: input, shape index: {}]
  %s2 = inlined_call_operand.hbm [shape: f32[48,256], index: 2, kind: input, shape index: {}, may-alias: {2,3}]
  %s3 = inlined_call_operand.hbm [shape: f32[48,256], index: 3, kind: output, shape index: {}, may-alias: {2,3}]
  %s4 = sld [smem:[#allocation0]]
  $region49: #{tpu_custom_call.1} parent=0
    _
  %s6 = ssub.s32 1, %s4
  %s7 = scalar_select 0, %s6, %s4
  $region1: #{tpu_custom_call.1} parent=0
    #allocation2 [shape = 'u8[32768]{0}', space=vmem, size = 0x8000, scoped, tag = 'input window, operand 2']
    #allocation3 [shape = 's32[2]{0}', space=sflag, size = 0x8, scoped, tag = 'scoped memory for tpu_custom_call.1']
    #allocation4 [shape = 's32[2]{0}', space=sflag, size = 0x8, scoped, tag = 'scoped memory for tpu_custom_call.1']
    #allocation5 [shape = 'u8[32768]{0}', space=vmem, size = 0x8000, scoped, tag = 'output window, operand 0']
    %8 = vsyncpa [#allocation3], 0
    %s9 = scalar_lea.sflag [#allocation3], 1
    %10 = vsyncpa %s9, 0
    %11 = vsyncpa [#allocation4], 0
    %s12 = scalar_lea.sflag [#allocation4], 1
    %13 = vsyncpa %s12, 0
    loop: start=0, step=1, limit=5
    $region2: #{tpu_custom_call.1} parent=1 // loop_pre_header
      _
    $region3: #{tpu_custom_call.1} parent=1 // loop_header
      %s15 = sphi 0, %s19
      %p16 = scmp.ge.s32.totalorder %s15, 5
      %s23 = sphi 0, %s23
      %s25 = sphi 0, %s23
      %s26 = sphi 0, %s25
      %s40 = sphi 0, %s26
      %s46 = sphi 0, %s48
      %s49 = sphi 0, %s46
      %s50 = sphi 0, %s49
      %s66 = sphi 0, %s50
      %s72 = sphi 0, %s74
      %s75 = sphi 0, %s72
      %s76 = sphi 0, %s75
      %s92 = sphi 0, %s76
      %s98 = sphi 0, %s100
      %s101 = sphi 0, %s98
      %s102 = sphi 0, %s101
      %s118 = sphi 0, %s102
    $region4: #{tpu_custom_call.1} parent=1 // loop_header_branch
      %18 = sbr.rel (%p16) target = $region8
    $region5: #{tpu_custom_call.1} parent=1 // loop_body
      %s20 = ssub.s32 %s15, 1
      %s21 = ssub.s32 %s15, 2
      %s22 = sadd.s32 %s15, 1
      %s24 = sadd.s32 %s23, 1
      %p27 = scmp.eq.s32.totalorder %s15, 2
      %p28 = scmp.ne.s32.totalorder %s23, %s25
      %p29 = scmp.eq.s32.totalorder %s15, 0
      %p30 = por %p28, %p29
      %p31 = scmp.ne.s32.totalorder %s23, %s25
      %p32 = scmp.eq.s32.totalorder %s20, 2
      %p33 = por %p31, %p32
      %p34 = scmp.ne.s32.totalorder %s25, %s26
      %p35 = scmp.eq.s32.totalorder %s20, 0
      %p36 = por %p34, %p35
      %p37 = scmp.ne.s32.totalorder %s25, %s26
      %p38 = scmp.eq.s32.totalorder %s21, 2
      %p39 = por %p37, %p38
      %p41 = scmp.ne.s32.totalorder %s26, %s40
      %p42 = scmp.eq.s32.totalorder %s21, 0
      %p43 = por %p41, %p42
      %s44 = ssub.s32 %s15, %s22
      %p45 = scmp.eq.s32.totalorder %s44, 0
      %s47 = sadd.s32 %s46, 1
      %s48 = scalar_select %p45, %s46, %s47
      %p51 = pneg %p45
      %p52 = scmp.eq.s32.totalorder %s15, 2
      %p53 = por %p51, %p52
      %p54 = scmp.ne.s32.totalorder %s46, %s49
      %p55 = scmp.eq.s32.totalorder %s15, 0
      %p56 = por %p54, %p55
      %p57 = scmp.ne.s32.totalorder %s46, %s49
      %p58 = scmp.eq.s32.totalorder %s20, 2
      %p59 = por %p57, %p58
      %p60 = scmp.ne.s32.totalorder %s49, %s50
      %p61 = scmp.eq.s32.totalorder %s20, 0
      %p62 = por %p60, %p61
      %p63 = scmp.ne.s32.totalorder %s49, %s50
      %p64 = scmp.eq.s32.totalorder %s21, 2
      %p65 = por %p63, %p64
      %p67 = scmp.ne.s32.totalorder %s50, %s66
      %p68 = scmp.eq.s32.totalorder %s21, 0
      %p69 = por %p67, %p68
      %s70 = ssub.s32 %s15, %s22
      %p71 = scmp.eq.s32.totalorder %s70, 0
      %s73 = sadd.s32 %s72, 1
      %s74 = scalar_select %p71, %s72, %s73
      %p77 = pneg %p71
      %p78 = scmp.eq.s32.totalorder %s15, 2
      %p79 = por %p77, %p78
      %p80 = scmp.ne.s32.totalorder %s72, %s75
      %p81 = scmp.eq.s32.totalorder %s15, 0
      %p82 = por %p80, %p81
      %p83 = scmp.ne.s32.totalorder %s72, %s75
      %p84 = scmp.eq.s32.totalorder %s20, 2
      %p85 = por %p83, %p84
      %p86 = scmp.ne.s32.totalorder %s75, %s76
      %p87 = scmp.eq.s32.totalorder %s20, 0
      %p88 = por %p86, %p87
      %p89 = scmp.ne.s32.totalorder %s75, %s76
      %p90 = scmp.eq.s32.totalorder %s21, 2
      %p91 = por %p89, %p90
      %p93 = scmp.ne.s32.totalorder %s76, %s92
      %p94 = scmp.eq.s32.totalorder %s21, 0
      %p95 = por %p93, %p94
      %s96 = ssub.s32 %s15, %s22
      %p97 = scmp.eq.s32.totalorder %s96, 0
      %s99 = sadd.s32 %s98, 1
      %s100 = scalar_select %p97, %s98, %s99
      %p103 = pneg %p97
      %p104 = scmp.eq.s32.totalorder %s15, 2
      %p105 = por %p103, %p104
      %p106 = scmp.ne.s32.totalorder %s98, %s101
      %p107 = scmp.eq.s32.totalorder %s15, 0
      %p108 = por %p106, %p107
      %p109 = scmp.ne.s32.totalorder %s98, %s101
      %p110 = scmp.eq.s32.totalorder %s20, 2
      %p111 = por %p109, %p110
      %p112 = scmp.ne.s32.totalorder %s101, %s102
      %p113 = scmp.eq.s32.totalorder %s20, 0
      %p114 = por %p112, %p113
      %p115 = scmp.ne.s32.totalorder %s101, %s102
      %p116 = scmp.eq.s32.totalorder %s21, 2
      %p117 = por %p115, %p116
      %p119 = scmp.ne.s32.totalorder %s102, %s118
      %p120 = scmp.eq.s32.totalorder %s21, 0
      %p121 = por %p119, %p120
      %p122 = scmp.le.s32.totalorder 1, %s15
      %p123 = scmp.lt.s32.totalorder %s15, 4
      %p124 = pnand %p122, %p123
      %p125 = pneg %p124
      // Predicated region
      $region9: #{tpu_custom_call.1} parent=5 // pred_check
        _
      $region10: #{tpu_custom_call.1} parent=5 // pred_check_branch
        %127 = sbr.rel (%p124) target = $region12
      $region11: #{tpu_custom_call.1} parent=5 // pred_region
        %s128 = ssub.s32 %s15, 1
        // Predicated region
        $region13: #{tpu_custom_call.1} parent=11 // pred_check
          %p129 = pneg %p36
        $region14: #{tpu_custom_call.1} parent=11 // pred_check_branch
          %131 = sbr.rel (%p129) target = $region16
        $region15: #{tpu_custom_call.1} parent=11 // pred_region
          _
        $region16: #{tpu_custom_call.1} parent=11 // pred_fallthru
          _
      $region12: #{tpu_custom_call.1} parent=5 // pred_fallthru
        _
      %p132 = scmp.lt.s32.totalorder %s15, 3
      // Predicated region
      $region17: #{tpu_custom_call.1} parent=5 // pred_check
        %p133 = pneg %p132
      $region18: #{tpu_custom_call.1} parent=5 // pred_check_branch
        %135 = sbr.rel (%p133) target = $region20
      $region19: #{tpu_custom_call.1} parent=5 // pred_region
        // Predicated region
        $region21: #{tpu_custom_call.1} parent=19 // pred_check
          %p136 = pneg %p56
        $region22: #{tpu_custom_call.1} parent=19 // pred_check_branch
          %138 = sbr.rel (%p136) target = $region24
        $region23: #{tpu_custom_call.1} parent=19 // pred_region
          %s139 = smul.u32 2, %s15
          %p140 = scmp.lt.s32.totalorder %s139, 5
          %s141 = scalar_select %p140, %s139, 5
          %s142 = smul.addr %s141, 8
          %s143 = scalar_lea.vmem %s1, %s142
          %s144 = smul.u32 2, %s15
        $region24: #{tpu_custom_call.1} parent=19 // pred_fallthru
          _
        // Predicated region
        $region25: #{tpu_custom_call.1} parent=19 // pred_check
          %p145 = pneg %p82
        $region26: #{tpu_custom_call.1} parent=19 // pred_check_branch
          %147 = sbr.rel (%p145) target = $region28
        $region27: #{tpu_custom_call.1} parent=19 // pred_region
          %s148 = sand.u32 %s72, 1
          %s149 = scalar_lea.sflag [#allocation3], %s148
          %s150 = sand.u32 %s72, 1
          %s151 = smul.addr %s150, 32
          %s152 = scalar_lea.vmem [#allocation2], %s151
          %s153 = smul.u32 2, %s15
          %s155 = ssub.s32 512, 512
          %156 = vsyncadd %s149, %s155
          %s157 = smul.addr %s153, 2
          %s158 = smul.addr %s157, 128
          %s159 = scalar_lea.hbm %s2, %s158
          %s160 = sshll.u32 %s152, 4
          %s161 = int_to_ptr.vmem [resolvable:$true] %s160
          %166 = dma.hbm_to_vmem [thread:$0]  %s159, 512, %s161, %s149, 256, 256, 16
        $region28: #{tpu_custom_call.1} parent=19 // pred_fallthru
          _
      $region20: #{tpu_custom_call.1} parent=5 // pred_fallthru
        _
      %p167 = scmp.le.s32.totalorder 1, %s15
      %p168 = scmp.lt.s32.totalorder %s15, 4
      %p169 = pnand %p167, %p168
      %p170 = pneg %p169
      // Predicated region
      $region29: #{tpu_custom_call.1} parent=5 // pred_check
        _
      $region30: #{tpu_custom_call.1} parent=5 // pred_check_branch
        %172 = sbr.rel (%p169) target = $region32
      $region31: #{tpu_custom_call.1} parent=5 // pred_region
        %s173 = ssub.s32 %s15, 1
        %s174 = sand.u32 %s75, 1
        %s175 = scalar_lea.sflag [#allocation3], %s174
        %s176 = sand.u32 %s75, 1
        %s177 = smul.addr %s176, 32
        %s178 = scalar_lea.vmem [#allocation2], %s177
        // Predicated region
        $region33: #{tpu_custom_call.1} parent=31 // pred_check
          %p179 = pneg %p88
        $region34: #{tpu_custom_call.1} parent=31 // pred_check_branch
          %181 = sbr.rel (%p179) target = $region36
        $region35: #{tpu_custom_call.1} parent=31 // pred_region
          %182 = dma.done %s175, 512
        $region36: #{tpu_custom_call.1} parent=31 // pred_fallthru
          _
        %p183 = pneg %p36
        %p184 = pneg %p33
        %s185 = smul.u32 2, %s20
        %p186 = scmp.lt.s32.totalorder %s185, 5
        %s187 = scalar_select %p186, %s185, 5
        %s188 = smul.addr %s187, 8
        %s189 = scalar_lea.vmem %s1, %s188
        %p190 = pneg %p62
        %p191 = pneg %p59
        %s192 = sand.u32 %s75, 1
        %s193 = scalar_lea.sflag [#allocation3], %s192
        %s194 = sand.u32 %s75, 1
        %s195 = smul.addr %s194, 32
        %s196 = scalar_lea.vmem [#allocation2], %s195
        %p197 = pneg %p88
        %p198 = pneg %p85
        %p199 = pneg %p114
        %p200 = pneg %p111
        %s201 = sand.u32 %s101, 1
        %s202 = scalar_lea.sflag [#allocation4], %s201
        %s203 = sand.u32 %s101, 1
        %s204 = smul.addr %s203, 32
        %s205 = scalar_lea.vmem [#allocation5], %s204
        %s206 = smul.u32 2, %s20
        %p207 = scmp.lt.s32.totalorder %s206, 5
        %s208 = scalar_select %p207, %s206, 5
        %s209 = smul.addr %s208, 8
        %s210 = scalar_lea.vmem %s1, %s209
        %s211 = smul.u32 2, %s20
        %s212 = smul.u32 2, %s20
        %s213 = smul.u32 2, %s20
        %v214 = vld [vmem:[%s0] sm:$0x1]
        %v215 = vld [vmem:[%s210] sm:$0xff]
        %v216 = vld [vmem:[%s210 + $0x8] sm:$0xff]
        %218 = vset.pattern.permute.xlu0 0
        %219 = vperm.xlu0 %218, %v215
        %v220 = vpop.permute.xlu0 %219
        %223 = vset.pattern.permute.xlu0 0
        %224 = vperm.xlu0 %223, %v216
        %v225 = vpop.permute.xlu0 %224
        %v228 = vlaneseq
        %v229 = vshrl.u32 %v228, 7
        %v230 = vsub.s32 0, %v229
        %v231 = vrot.slane %v214, %v230
        %v233 = vmul.f32 %v220, %v231
        %v234 = vmul.f32 %v225, %v231
        %235 = vset.pattern.permute.xlu0 1
        %236 = vperm.xlu0 %235, %v215
        %v237 = vpop.permute.xlu0 %236
        %239 = vset.pattern.permute.xlu0 1
        %240 = vperm.xlu0 %239, %v216
        %v241 = vpop.permute.xlu0 %240
        %v243 = vadd.f32 %v233, %v237
        %v244 = vadd.f32 %v234, %v241
        %v245 = vmul.f32 %v214, %v214
        %v246 = vsub.f32 0.0, %v245
        %v248 = vlaneseq
        %v249 = vshrl.u32 %v248, 7
        %v250 = vsub.s32 0, %v249
        %v251 = vrot.slane %v246, %v250
        %253 = vset.pattern.permute.xlu0 2
        %254 = vperm.xlu0 %253, %v215
        %v255 = vpop.permute.xlu0 %254
        %257 = vset.pattern.permute.xlu0 2
        %258 = vperm.xlu0 %257, %v216
        %v259 = vpop.permute.xlu0 %258
        %v261 = vmul.f32 %v251, %v255
        %v262 = vmul.f32 %v251, %v259
        %v263 = vmul.f32 %v261, 1.442695
        %v264 = vpow.pop %v263
        %v265 = vmul.f32 %v262, 1.442695
        %v266 = vpow.pop %v265
        %v267 = vand.u32 2147483647, %v243
        %vm268 = vcmp.le.f32.partialorder %v267, 0.7853982
        %vm269 = vcmp.lt.s32.totalorder %v243, 0
        %v270 = vand.u32 %v243, 2139095040
        %v271 = vshrl.u32 %v270, 23
        %v272 = vsub.s32 %v271, 127
        %v273 = vand.u32 2147483647, %v243
        %v274 = vand.u32 %v273, 8388607
        %v275 = vor.u32 %v274, 8388608
        %v276 = vsub.s32 0, %v275
        %v277 = vadd.s32 %v272, 1
        %vm278 = vcmp.gt.s32.totalorder %v277, 0
        %v279 = vsel %vm278, %v277, 0
        %v280 = vshrl.u32 %v279, 5
        %v281 = vand.u32 %v279, 31
        %v282 = vsub.s32 32, %v281
        %v283 = vshrl.u32 683565275, %v282
        %v284 = vshll.u32 683565275, %v281
        %v285 = vshrl.u32 2475754826, %v282
        %v286 = vor.u32 %v284, %v285
        %v287 = vshll.u32 2475754826, %v281
        %v288 = vshrl.u32 2131351028, %v282
        %v289 = vor.u32 %v287, %v288
        %v290 = vshll.u32 2131351028, %v281
        %v291 = vshrl.u32 2102212464, %v282
        %v292 = vor.u32 %v290, %v291
        %v293 = vshll.u32 2102212464, %v281
        %v294 = vshrl.u32 920167782, %v282
        %v295 = vor.u32 %v293, %v294
        %v296 = vshll.u32 920167782, %v281
        %v297 = vshrl.u32 1326507024, %v282
        %v298 = vor.u32 %v296, %v297
        %vm299 = vcmp.lt.s32.totalorder %v280, 1
        %vm300 = vcmp.lt.s32.totalorder %v280, 2
        %vm301 = vcmp.lt.s32.totalorder %v280, 3
        %vm302 = vcmp.lt.s32.totalorder %v280, 4
        %v303 = vsel %vm299, %v283, %v286
        %v304 = vsel %vm302, %v292, 2102212464
        %v305 = vsel %vm301, %v289, %v304
        %v306 = vsel %vm300, %v303, %v305
        %v307 = vsel %vm299, %v286, %v289
        %v308 = vsel %vm302, %v295, 920167782
        %v309 = vsel %vm301, %v292, %v308
        %v310 = vsel %vm300, %v307, %v309
        %v311 = vsel %vm299, %v289, %v292
        %v312 = vsel %vm302, %v298, 1326507024
        %v313 = vsel %vm301, %v295, %v312
        %v314 = vsel %vm300, %v311, %v313
        %v315 = vshll.u32 %v275, 8
        %v316 = vmul.u32.u64.compose %v315, %v314
        %v317 = vextract.low.u32 %v316
        %v318 = vextract.high.u32 %v316
        %v319 = vmul.u32.u64.compose %v315, %v310
        %v320 = vextract.low.u32 %v319
        %v321 = vextract.high.u32 %v319
        %v322 = vmul.u32 %v315, %v306
        %v323 = vadd.s32 %v318, %v320
        %vm324 = vc.u32 %v318, %v320
        %v325 = vadd.s32 %v321, 1
        %v326 = vsel %vm324, %v325, %v321
        %v327 = vadd.s32 %v322, %v326
        %v328 = vadd.s32 %v327, 536870912
        %v329 = vshrl.u32 %v328, 30
        %v330 = vshll.u32 %v329, 30
        %v331 = vsub.s32 %v327, %v330
        %vm332 = vcmp.lt.s32.totalorder %v331, 0
        %v333 = vsub.s32 0, %v331
        %v334 = vsel %vm332, %v333, %v331
        %v335 = vclz %v334
        %v336 = vsub.s32 %v335, 2
        %vm337 = vcmp.gt.s32.totalorder 0, %v336
        %v338 = vsel %vm337, 0, %v336
        %v339 = vsub.s32 32, %v338
        %v340 = vshll.u32 %v331, %v338
        %v341 = vshrl.u32 %v323, %v339
        %v342 = vor.u32 %v340, %v341
        %v343 = vsub.s32 4294967266, %v338
        %v344 = vadd.s32 %v343, 127
        %v345 = vshll.u32 %v344, 23
        %v346 = vor.u32 4788187, %v345
        %v347 = vand.u32 2147483647, %v346
        %v349 = vcvt.s32.f32 %v342
        %v350 = vmul.f32 %v349, %v347
        %v351 = vxor.u32 %v350, 2147483648
        %v352 = vsel %vm269, %v351, %v350
        %v353 = vsub.s32 4, %v329
        %v354 = vsel %vm269, %v353, %v329
        %v355 = vsel %vm268, %v243, %v352
        %v356 = vsel %vm268, 0, %v354
        %v357 = vcosq.f32.pop %v355
        %v358 = vsinq.f32.pop %v355
        %vm359 = vweird.f32 %v243
        %v360 = vand.u32 %v356, 3
        %vm361 = vcmp.lt.s32.totalorder %v360, 2
        %vm362 = vcmp.eq.s32.totalorder %v360, 0
        %v363 = vxor.u32 %v358, 2147483648
        %v364 = vsel %vm362, %v357, %v363
        %vm365 = vcmp.eq.s32.totalorder %v360, 2
        %v366 = vxor.u32 %v357, 2147483648
        %v367 = vsel %vm365, %v366, %v358
        %v368 = vsel %vm361, %v364, %v367
        %v369 = vsel %vm359, nan, %v368
        %v370 = vand.u32 2147483647, %v244
        %vm371 = vcmp.le.f32.partialorder %v370, 0.7853982
        %vm372 = vcmp.lt.s32.totalorder %v244, 0
        %v373 = vand.u32 %v244, 2139095040
        %v374 = vshrl.u32 %v373, 23
        %v375 = vsub.s32 %v374, 127
        %v376 = vand.u32 2147483647, %v244
        %v377 = vand.u32 %v376, 8388607
        %v378 = vor.u32 %v377, 8388608
        %v379 = vsub.s32 0, %v378
        %v380 = vadd.s32 %v375, 1
        %vm381 = vcmp.gt.s32.totalorder %v380, 0
        %v382 = vsel %vm381, %v380, 0
        %v383 = vshrl.u32 %v382, 5
        %v384 = vand.u32 %v382, 31
        %v385 = vsub.s32 32, %v384
        %v386 = vshrl.u32 683565275, %v385
        %v387 = vshll.u32 683565275, %v384
        %v388 = vshrl.u32 2475754826, %v385
        %v389 = vor.u32 %v387, %v388
        %v390 = vshll.u32 2475754826, %v384
        %v391 = vshrl.u32 2131351028, %v385
        %v392 = vor.u32 %v390, %v391
        %v393 = vshll.u32 2131351028, %v384
        %v394 = vshrl.u32 2102212464, %v385
        %v395 = vor.u32 %v393, %v394
        %v396 = vshll.u32 2102212464, %v384
        %v397 = vshrl.u32 920167782, %v385
        %v398 = vor.u32 %v396, %v397
        %v399 = vshll.u32 920167782, %v384
        %v400 = vshrl.u32 1326507024, %v385
        %v401 = vor.u32 %v399, %v400
        %vm402 = vcmp.lt.s32.totalorder %v383, 1
        %vm403 = vcmp.lt.s32.totalorder %v383, 2
        %vm404 = vcmp.lt.s32.totalorder %v383, 3
        %vm405 = vcmp.lt.s32.totalorder %v383, 4
        %v406 = vsel %vm402, %v386, %v389
        %v407 = vsel %vm405, %v395, 2102212464
        %v408 = vsel %vm404, %v392, %v407
        %v409 = vsel %vm403, %v406, %v408
        %v410 = vsel %vm402, %v389, %v392
        %v411 = vsel %vm405, %v398, 920167782
        %v412 = vsel %vm404, %v395, %v411
        %v413 = vsel %vm403, %v410, %v412
        %v414 = vsel %vm402, %v392, %v395
        %v415 = vsel %vm405, %v401, 1326507024
        %v416 = vsel %vm404, %v398, %v415
        %v417 = vsel %vm403, %v414, %v416
        %v418 = vshll.u32 %v378, 8
        %v419 = vmul.u32.u64.compose %v418, %v417
        %v420 = vextract.low.u32 %v419
        %v421 = vextract.high.u32 %v419
        %v422 = vmul.u32.u64.compose %v418, %v413
        %v423 = vextract.low.u32 %v422
        %v424 = vextract.high.u32 %v422
        %v425 = vmul.u32 %v418, %v409
        %v426 = vadd.s32 %v421, %v423
        %vm427 = vc.u32 %v421, %v423
        %v428 = vadd.s32 %v424, 1
        %v429 = vsel %vm427, %v428, %v424
        %v430 = vadd.s32 %v425, %v429
        %v431 = vadd.s32 %v430, 536870912
        %v432 = vshrl.u32 %v431, 30
        %v433 = vshll.u32 %v432, 30
        %v434 = vsub.s32 %v430, %v433
        %vm435 = vcmp.lt.s32.totalorder %v434, 0
        %v436 = vsub.s32 0, %v434
        %v437 = vsel %vm435, %v436, %v434
        %v438 = vclz %v437
        %v439 = vsub.s32 %v438, 2
        %vm440 = vcmp.gt.s32.totalorder 0, %v439
        %v441 = vsel %vm440, 0, %v439
        %v442 = vsub.s32 32, %v441
        %v443 = vshll.u32 %v434, %v441
        %v444 = vshrl.u32 %v426, %v442
        %v445 = vor.u32 %v443, %v444
        %v446 = vsub.s32 4294967266, %v441
        %v447 = vadd.s32 %v446, 127
        %v448 = vshll.u32 %v447, 23
        %v449 = vor.u32 4788187, %v448
        %v450 = vand.u32 2147483647, %v449
        %v452 = vcvt.s32.f32 %v445
        %v453 = vmul.f32 %v452, %v450
        %v454 = vxor.u32 %v453, 2147483648
        %v455 = vsel %vm372, %v454, %v453
        %v456 = vsub.s32 4, %v432
        %v457 = vsel %vm372, %v456, %v432
        %v458 = vsel %vm371, %v244, %v455
        %v459 = vsel %vm371, 0, %v457
        %v460 = vcosq.f32.pop %v458
        %v461 = vsinq.f32.pop %v458
        %vm462 = vweird.f32 %v244
        %v463 = vand.u32 %v459, 3
        %vm464 = vcmp.lt.s32.totalorder %v463, 2
        %vm465 = vcmp.eq.s32.totalorder %v463, 0
        %v466 = vxor.u32 %v461, 2147483648
        %v467 = vsel %vm465, %v460, %v466
        %vm468 = vcmp.eq.s32.totalorder %v463, 2
        %v469 = vxor.u32 %v460, 2147483648
        %v470 = vsel %vm468, %v469, %v461
        %v471 = vsel %vm464, %v467, %v470
        %v472 = vsel %vm462, nan, %v471
        %v473 = vmul.f32 %v264, %v369
        %v474 = vmul.f32 %v266, %v472
        %v475 = vand.u32 2147483647, %v243
        %vm476 = vcmp.le.f32.partialorder %v475, 0.7853982
        %vm477 = vcmp.lt.s32.totalorder %v243, 0
        %v478 = vand.u32 %v243, 2139095040
        %v479 = vshrl.u32 %v478, 23
        %v480 = vsub.s32 %v479, 127
        %v481 = vand.u32 2147483647, %v243
        %v482 = vand.u32 %v481, 8388607
        %v483 = vor.u32 %v482, 8388608
        %v484 = vsub.s32 0, %v483
        %v485 = vadd.s32 %v480, 1
        %vm486 = vcmp.gt.s32.totalorder %v485, 0
        %v487 = vsel %vm486, %v485, 0
        %v488 = vshrl.u32 %v487, 5
        %v489 = vand.u32 %v487, 31
        %v490 = vsub.s32 32, %v489
        %v491 = vshrl.u32 683565275, %v490
        %v492 = vshll.u32 683565275, %v489
        %v493 = vshrl.u32 2475754826, %v490
        %v494 = vor.u32 %v492, %v493
        %v495 = vshll.u32 2475754826, %v489
        %v496 = vshrl.u32 2131351028, %v490
        %v497 = vor.u32 %v495, %v496
        %v498 = vshll.u32 2131351028, %v489
        %v499 = vshrl.u32 2102212464, %v490
        %v500 = vor.u32 %v498, %v499
        %v501 = vshll.u32 2102212464, %v489
        %v502 = vshrl.u32 920167782, %v490
        %v503 = vor.u32 %v501, %v502
        %v504 = vshll.u32 920167782, %v489
        %v505 = vshrl.u32 1326507024, %v490
        %v506 = vor.u32 %v504, %v505
        %vm507 = vcmp.lt.s32.totalorder %v488, 1
        %vm508 = vcmp.lt.s32.totalorder %v488, 2
        %vm509 = vcmp.lt.s32.totalorder %v488, 3
        %vm510 = vcmp.lt.s32.totalorder %v488, 4
        %v511 = vsel %vm507, %v491, %v494
        %v512 = vsel %vm510, %v500, 2102212464
        %v513 = vsel %vm509, %v497, %v512
        %v514 = vsel %vm508, %v511, %v513
        %v515 = vsel %vm507, %v494, %v497
        %v516 = vsel %vm510, %v503, 920167782
        %v517 = vsel %vm509, %v500, %v516
        %v518 = vsel %vm508, %v515, %v517
        %v519 = vsel %vm507, %v497, %v500
        %v520 = vsel %vm510, %v506, 1326507024
        %v521 = vsel %vm509, %v503, %v520
        %v522 = vsel %vm508, %v519, %v521
        %v523 = vshll.u32 %v483, 8
        %v524 = vmul.u32.u64.compose %v523, %v522
        %v525 = vextract.low.u32 %v524
        %v526 = vextract.high.u32 %v524
        %v527 = vmul.u32.u64.compose %v523, %v518
        %v528 = vextract.low.u32 %v527
        %v529 = vextract.high.u32 %v527
        %v530 = vmul.u32 %v523, %v514
        %v531 = vadd.s32 %v526, %v528
        %vm532 = vc.u32 %v526, %v528
        %v533 = vadd.s32 %v529, 1
        %v534 = vsel %vm532, %v533, %v529
        %v535 = vadd.s32 %v530, %v534
        %v536 = vadd.s32 %v535, 536870912
        %v537 = vshrl.u32 %v536, 30
        %v538 = vshll.u32 %v537, 30
        %v539 = vsub.s32 %v535, %v538
        %vm540 = vcmp.lt.s32.totalorder %v539, 0
        %v541 = vsub.s32 0, %v539
        %v542 = vsel %vm540, %v541, %v539
        %v543 = vclz %v542
        %v544 = vsub.s32 %v543, 2
        %vm545 = vcmp.gt.s32.totalorder 0, %v544
        %v546 = vsel %vm545, 0, %v544
        %v547 = vsub.s32 32, %v546
        %v548 = vshll.u32 %v539, %v546
        %v549 = vshrl.u32 %v531, %v547
        %v550 = vor.u32 %v548, %v549
        %v551 = vsub.s32 4294967266, %v546
        %v552 = vadd.s32 %v551, 127
        %v553 = vshll.u32 %v552, 23
        %v554 = vor.u32 4788187, %v553
        %v555 = vand.u32 2147483647, %v554
        %v557 = vcvt.s32.f32 %v550
        %v558 = vmul.f32 %v557, %v555
        %v559 = vxor.u32 %v558, 2147483648
        %v560 = vsel %vm477, %v559, %v558
        %v561 = vsub.s32 4, %v537
        %v562 = vsel %vm477, %v561, %v537
        %v563 = vsel %vm476, %v243, %v560
        %v564 = vsel %vm476, 0, %v562
        %v565 = vcosq.f32.pop %v563
        %v566 = vsinq.f32.pop %v563
        %vm567 = vweird.f32 %v243
        %v568 = vadd.s32 %v564, 3
        %v569 = vand.u32 %v568, 3
        %vm570 = vcmp.lt.s32.totalorder %v569, 2
        %vm571 = vcmp.eq.s32.totalorder %v569, 0
        %v572 = vxor.u32 %v566, 2147483648
        %v573 = vsel %vm571, %v565, %v572
        %vm574 = vcmp.eq.s32.totalorder %v569, 2
        %v575 = vxor.u32 %v565, 2147483648
        %v576 = vsel %vm574, %v575, %v566
        %v577 = vsel %vm570, %v573, %v576
        %v578 = vsel %vm567, nan, %v577
        %v579 = vand.u32 2147483647, %v244
        %vm580 = vcmp.le.f32.partialorder %v579, 0.7853982
        %vm581 = vcmp.lt.s32.totalorder %v244, 0
        %v582 = vand.u32 %v244, 2139095040
        %v583 = vshrl.u32 %v582, 23
        %v584 = vsub.s32 %v583, 127
        %v585 = vand.u32 2147483647, %v244
        %v586 = vand.u32 %v585, 8388607
        %v587 = vor.u32 %v586, 8388608
        %v588 = vsub.s32 0, %v587
        %v589 = vadd.s32 %v584, 1
        %vm590 = vcmp.gt.s32.totalorder %v589, 0
        %v591 = vsel %vm590, %v589, 0
        %v592 = vshrl.u32 %v591, 5
        %v593 = vand.u32 %v591, 31
        %v594 = vsub.s32 32, %v593
        %v595 = vshrl.u32 683565275, %v594
        %v596 = vshll.u32 683565275, %v593
        %v597 = vshrl.u32 2475754826, %v594
        %v598 = vor.u32 %v596, %v597
        %v599 = vshll.u32 2475754826, %v593
        %v600 = vshrl.u32 2131351028, %v594
        %v601 = vor.u32 %v599, %v600
        %v602 = vshll.u32 2131351028, %v593
        %v603 = vshrl.u32 2102212464, %v594
        %v604 = vor.u32 %v602, %v603
        %v605 = vshll.u32 2102212464, %v593
        %v606 = vshrl.u32 920167782, %v594
        %v607 = vor.u32 %v605, %v606
        %v608 = vshll.u32 920167782, %v593
        %v609 = vshrl.u32 1326507024, %v594
        %v610 = vor.u32 %v608, %v609
        %vm611 = vcmp.lt.s32.totalorder %v592, 1
        %vm612 = vcmp.lt.s32.totalorder %v592, 2
        %vm613 = vcmp.lt.s32.totalorder %v592, 3
        %vm614 = vcmp.lt.s32.totalorder %v592, 4
        %v615 = vsel %vm611, %v595, %v598
        %v616 = vsel %vm614, %v604, 2102212464
        %v617 = vsel %vm613, %v601, %v616
        %v618 = vsel %vm612, %v615, %v617
        %v619 = vsel %vm611, %v598, %v601
        %v620 = vsel %vm614, %v607, 920167782
        %v621 = vsel %vm613, %v604, %v620
        %v622 = vsel %vm612, %v619, %v621
        %v623 = vsel %vm611, %v601, %v604
        %v624 = vsel %vm614, %v610, 1326507024
        %v625 = vsel %vm613, %v607, %v624
        %v626 = vsel %vm612, %v623, %v625
        %v627 = vshll.u32 %v587, 8
        %v628 = vmul.u32.u64.compose %v627, %v626
        %v629 = vextract.low.u32 %v628
        %v630 = vextract.high.u32 %v628
        %v631 = vmul.u32.u64.compose %v627, %v622
        %v632 = vextract.low.u32 %v631
        %v633 = vextract.high.u32 %v631
        %v634 = vmul.u32 %v627, %v618
        %v635 = vadd.s32 %v630, %v632
        %vm636 = vc.u32 %v630, %v632
        %v637 = vadd.s32 %v633, 1
        %v638 = vsel %vm636, %v637, %v633
        %v639 = vadd.s32 %v634, %v638
        %v640 = vadd.s32 %v639, 536870912
        %v641 = vshrl.u32 %v640, 30
        %v642 = vshll.u32 %v641, 30
        %v643 = vsub.s32 %v639, %v642
        %vm644 = vcmp.lt.s32.totalorder %v643, 0
        %v645 = vsub.s32 0, %v643
        %v646 = vsel %vm644, %v645, %v643
        %v647 = vclz %v646
        %v648 = vsub.s32 %v647, 2
        %vm649 = vcmp.gt.s32.totalorder 0, %v648
        %v650 = vsel %vm649, 0, %v648
        %v651 = vsub.s32 32, %v650
        %v652 = vshll.u32 %v643, %v650
        %v653 = vshrl.u32 %v635, %v651
        %v654 = vor.u32 %v652, %v653
        %v655 = vsub.s32 4294967266, %v650
        %v656 = vadd.s32 %v655, 127
        %v657 = vshll.u32 %v656, 23
        %v658 = vor.u32 4788187, %v657
        %v659 = vand.u32 2147483647, %v658
        %v661 = vcvt.s32.f32 %v654
        %v662 = vmul.f32 %v661, %v659
        %v663 = vxor.u32 %v662, 2147483648
        %v664 = vsel %vm581, %v663, %v662
        %v665 = vsub.s32 4, %v641
        %v666 = vsel %vm581, %v665, %v641
        %v667 = vsel %vm580, %v244, %v664
        %v668 = vsel %vm580, 0, %v666
        %v669 = vcosq.f32.pop %v667
        %v670 = vsinq.f32.pop %v667
        %vm671 = vweird.f32 %v244
        %v672 = vadd.s32 %v668, 3
        %v673 = vand.u32 %v672, 3
        %vm674 = vcmp.lt.s32.totalorder %v673, 2
        %vm675 = vcmp.eq.s32.totalorder %v673, 0
        %v676 = vxor.u32 %v670, 2147483648
        %v677 = vsel %vm675, %v669, %v676
        %vm678 = vcmp.eq.s32.totalorder %v673, 2
        %v679 = vxor.u32 %v669, 2147483648
        %v680 = vsel %vm678, %v679, %v670
        %v681 = vsel %vm674, %v677, %v680
        %v682 = vsel %vm671, nan, %v681
        %v683 = vmul.f32 %v264, %v578
        %v684 = vmul.f32 %v266, %v682
        %685 = vset.pattern.permute.xlu0 3
        %686 = vperm.xlu0 %685, %v215
        %v687 = vpop.permute.xlu0 %686
        %689 = vset.pattern.permute.xlu0 3
        %690 = vperm.xlu0 %689, %v216
        %v691 = vpop.permute.xlu0 %690
        %v693 = vmul.f32 %v687, %v473
        %v694 = vmul.f32 %v691, %v474
        %695 = vset.pattern.permute.xlu0 5
        %696 = vperm.xlu0 %695, %v215
        %v697 = vpop.permute.xlu0 %696
        %699 = vset.pattern.permute.xlu0 5
        %700 = vperm.xlu0 %699, %v216
        %v701 = vpop.permute.xlu0 %700
        %v703 = vmul.f32 %v697, %v683
        %v704 = vmul.f32 %v701, %v684
        %v705 = vadd.f32 %v693, %v703
        %v706 = vadd.f32 %v694, %v704
        %707 = vset.pattern.permute.xlu0 4
        %708 = vperm.xlu0 %707, %v215
        %v709 = vpop.permute.xlu0 %708
        %711 = vset.pattern.permute.xlu0 4
        %712 = vperm.xlu0 %711, %v216
        %v713 = vpop.permute.xlu0 %712
        %v715 = vmul.f32 %v709, %v473
        %v716 = vmul.f32 %v713, %v474
        %717 = vset.pattern.permute.xlu0 6
        %718 = vperm.xlu0 %717, %v215
        %v719 = vpop.permute.xlu0 %718
        %721 = vset.pattern.permute.xlu0 6
        %722 = vperm.xlu0 %721, %v216
        %v723 = vpop.permute.xlu0 %722
        %v725 = vmul.f32 %v719, %v683
        %v726 = vmul.f32 %v723, %v684
        %v727 = vadd.f32 %v715, %v725
        %v728 = vadd.f32 %v716, %v726
        %v729 = vld [vmem:[%s178] sm:$0xff]
        %v730 = vld [vmem:[%s178 + $0x8] sm:$0xff]
        %v731 = vld [vmem:[%s178 + $0x10] sm:$0xff]
        %v732 = vld [vmem:[%s178 + $0x18] sm:$0xff]
        %v733 = vadd.f32 %v729, %v705
        %v734 = vadd.f32 %v730, %v727
        %v735 = vadd.f32 %v731, %v706
        %v736 = vadd.f32 %v732, %v728
        %737 = vst [vmem:[%s205] sm:$0xff] %v733
        %738 = vst [vmem:[%s205 + $0x8] sm:$0xff] %v734
        %739 = vst [vmem:[%s205 + $0x10] sm:$0xff] %v735
        %740 = vst [vmem:[%s205 + $0x18] sm:$0xff] %v736
        %s741 = sand.u32 %s101, 1
        %s742 = scalar_lea.sflag [#allocation4], %s741
        %s743 = sand.u32 %s101, 1
        %s744 = smul.addr %s743, 32
        %s745 = scalar_lea.vmem [#allocation5], %s744
        // Predicated region
        $region37: #{tpu_custom_call.1} parent=31 // pred_check
          %p746 = pneg %p111
        $region38: #{tpu_custom_call.1} parent=31 // pred_check_branch
          %748 = sbr.rel (%p746) target = $region40
        $region39: #{tpu_custom_call.1} parent=31 // pred_region
          %s749 = smul.u32 2, %s20
          %s751 = ssub.s32 512, 512
          %752 = vsyncadd %s742, %s751
          %s753 = smul.addr %s749, 2
          %s754 = smul.addr %s753, 128
          %s755 = scalar_lea.hbm %s3, %s754
          %s756 = sshll.u32 %s745, 4
          %s757 = int_to_ptr.vmem [resolvable:$true] %s756
          %762 = dma.vmem_to_hbm [thread:$0]  %s757, 512, %s755, %s742, 256, 256, 16
        $region40: #{tpu_custom_call.1} parent=31 // pred_fallthru
          _
      $region32: #{tpu_custom_call.1} parent=5 // pred_fallthru
        _
      %p763 = scmp.le.s32.totalorder 2, %s15
      // Predicated region
      $region41: #{tpu_custom_call.1} parent=5 // pred_check
        %p764 = pneg %p763
      $region42: #{tpu_custom_call.1} parent=5 // pred_check_branch
        %766 = sbr.rel (%p764) target = $region44
      $region43: #{tpu_custom_call.1} parent=5 // pred_region
        %s767 = ssub.s32 %s15, 2
        // Predicated region
        $region45: #{tpu_custom_call.1} parent=43 // pred_check
          %p768 = pneg %p117
        $region46: #{tpu_custom_call.1} parent=43 // pred_check_branch
          %770 = sbr.rel (%p768) target = $region48
        $region47: #{tpu_custom_call.1} parent=43 // pred_region
          %s771 = sand.u32 %s102, 1
          %s772 = scalar_lea.sflag [#allocation4], %s771
          %s773 = sand.u32 %s102, 1
          %s774 = smul.addr %s773, 32
          %s775 = scalar_lea.vmem [#allocation5], %s774
          %776 = dma.done %s772, 512
        $region48: #{tpu_custom_call.1} parent=43 // pred_fallthru
          _
      $region44: #{tpu_custom_call.1} parent=5 // pred_fallthru
        _
    $region6: #{tpu_custom_call.1} parent=1 // loop_footer
      %s19 = sadd.s32 1, %s15
    $region7: #{tpu_custom_call.1} parent=1 // loop_footer_branch
      %14 = sbr.rel target = $region3
    $region8: #{tpu_custom_call.1} parent=1 // loop_exit
      _
    %777 = vsyncpa [#allocation3], 1
    %s778 = scalar_lea.sflag [#allocation3], 1
    %779 = vsyncpa %s778, 1
    %780 = vsyncpa [#allocation4], 1
    %s781 = scalar_lea.sflag [#allocation4], 1
    %782 = vsyncpa %s781, 1

</llo_original>
